<compile_context>
chip_gen: v5e
topology: v5e:2x2
jax: 0.10.0
libtpu: 0.0.40
codegen_flags: <defaults>
</compile_context>

<pallas_src>
import functools

import numpy as np
import jax
import jax.numpy as jnp
from jax import lax
from jax.experimental import pallas as pl
from jax.experimental.pallas import tpu as pltpu


def _pick_tile(n, target):
    """Largest lane-friendly tile <= target that divides n (or full n)."""
    if n <= target:
        return n
    t = (min(target, n) // 128) * 128
    while t >= 128:
        if n % t == 0:
            return t
        t -= 128
    return n


# ---------------------------------------------------------------------------
# Kernel 1: fused backbone stem (3->256 relu) + process_features (256->32)
# channels-first: Y = W2 @ relu(W1 @ X + b1) + b2, X = (Cin, tile_P)
# ---------------------------------------------------------------------------
def _fused_backbone_kernel(x_ref, w1_ref, b1_ref, w2_ref, b2_ref, o_ref,
                           *, cin):
    x = x_ref[0]                                   # (Cin, Tp) f32
    w1 = w1_ref[...]                               # (Cmid, Cin)
    # Cin is tiny (3): do the first layer as a VPU broadcast-sum instead of a
    # K=3 MXU matmul (same result, no MXU under-fill, guaranteed lowering).
    h = b1_ref[...] + w1[:, 0:1] * x[0:1, :]
    for i in range(1, cin):
        h = h + w1[:, i:i + 1] * x[i:i + 1, :]
    h = jnp.maximum(h, 0.0)                        # (Cmid, Tp)
    # process_features 256->32 on the MXU in bf16 (f32 accumulation).
    y = jnp.dot(w2_ref[...].astype(jnp.bfloat16), h.astype(jnp.bfloat16),
                preferred_element_type=jnp.float32) + b2_ref[...]
    o_ref[0] = y                                   # (Cout, Tp)


def fused_backbone(x, w1, b1, w2, b2, *, tile_p=8192):
    """x: (N, Cin, P); w1: (Cmid, Cin); w2: (Cout, Cmid); b*: (C, 1)."""
    N, Cin, P = x.shape
    Cmid = w1.shape[0]
    Cout = w2.shape[0]
    tp = _pick_tile(P, tile_p)
    kern = functools.partial(_fused_backbone_kernel, cin=Cin)
    return pl.pallas_call(
        kern,
        out_shape=jax.ShapeDtypeStruct((N, Cout, P), jnp.float32),
        grid_spec=pltpu.PrefetchScalarGridSpec(
            num_scalar_prefetch=0,
            grid=(N, P // tp),
            in_specs=[
                pl.BlockSpec((1, Cin, tp), lambda n, t: (n, 0, t)),
                pl.BlockSpec((Cmid, Cin), lambda n, t: (0, 0)),
                pl.BlockSpec((Cmid, 1), lambda n, t: (0, 0)),
                pl.BlockSpec((Cout, Cmid), lambda n, t: (0, 0)),
                pl.BlockSpec((Cout, 1), lambda n, t: (0, 0)),
            ],
            out_specs=pl.BlockSpec((1, Cout, tp), lambda n, t: (n, 0, t)),
        ),
        compiler_params=pltpu.CompilerParams(
            dimension_semantics=("parallel", "parallel")),
    )(x, w1, b1, w2, b2)


# ---------------------------------------------------------------------------
# Kernel 2: unproject 2D feature maps into the 3D coordinate volume
# (op.unproject_heatmaps, volume_aggregation_method='sum').
# Grid = (batch, voxel-tile, view); views accumulate into a VMEM scratch.
# ---------------------------------------------------------------------------
def _unproject_kernel(proj_ref, feat_ref, coord_ref, o_ref, acc_ref,
                      *, n_views, H, W):
    b = pl.program_id(0)
    v = pl.program_id(2)

    @pl.when(v == 0)
    def _():
        acc_ref[...] = jnp.zeros_like(acc_ref)

    coord = coord_ref[0]                          # (3, Tv)  coordinate-major
    cx = coord[0:1, :]
    cy = coord[1:2, :]
    cz = coord[2:3, :]

    base = (b * n_views + v) * 12                 # 3x4 projection in SMEM

    def P(i, j):
        return proj_ref[base + 4 * i + j]

    hx = P(0, 0) * cx + P(0, 1) * cy + P(0, 2) * cz + P(0, 3)
    hy = P(1, 0) * cx + P(1, 1) * cy + P(1, 2) * cz + P(1, 3)
    hz = P(2, 0) * cx + P(2, 1) * cy + P(2, 2) * cz + P(2, 3)

    invalid = hz <= 0.0
    hz_safe = jnp.where(invalid, 1.0, hz)
    inv_hz = pl.reciprocal(hz_safe, approx=True)  # EUP: frees the VALU slot
    sx = jnp.float32((W - 1) / W)                 # align_corners=True scaling
    sy = jnp.float32((H - 1) / H)
    xpix = hx * inv_hz * sx                       # pixel = p/size*(size-1)
    ypix = hy * inv_hz * sy
    # behind-camera samples: push BOTH coords far outside the map so every
    # bilinear weight vanishes (== zero padding + post-mask of the reference).
    xpix = jnp.where(invalid, -2.0, xpix)
    ypix = jnp.where(invalid, -2.0, ypix)

    # pixel index tables generated in-kernel (no lane-padded (HW,2) input)
    HW = H * W
    qlin = lax.broadcasted_iota(jnp.int32, (HW, 1), 0)
    qrow = (qlin // W).astype(jnp.float32)        # pixel y index
    qcol = (qlin % W).astype(jnp.float32)         # pixel x index

    # bilinear weights with zero padding: relu(1-|q-p|) outer products
    wrow = jnp.maximum(1.0 - jnp.abs(qrow - ypix), 0.0)   # (HW, Tv)
    wcol = jnp.maximum(1.0 - jnp.abs(qcol - xpix), 0.0)   # (HW, Tv)
    wmat = (wrow * wcol).astype(jnp.bfloat16)

    # TODO(synk): at production heatmap resolution this dense (C,HW)@(HW,Tv)
    # sampling matmul should become a 4-tap gather (manual DMA / scalar
    # prefetch) or an HW-blocked matmul that skips all-zero weight blocks.
    acc_ref[...] += jnp.dot(feat_ref[0, 0], wmat,          # bf16 MXU, f32 acc
                            preferred_element_type=jnp.float32)

    @pl.when(v == n_views - 1)
    def _():
        o_ref[0] = acc_ref[...]


def unproject_volumes(proj_matricies, feat_views, coord_cf, H, W,
                      *, tile_vox=512):
    """proj: (B,nv,3,4); feat_views: (B,nv,C,H*W) bf16; coord_cf: (B,3,Nvox)
    -> (B, C, Nvox) f32.  tile_vox should keep ~4*HW*Tv*4B of weight temps
    within VMEM (<=256 on v7x at HW=9216, <=512 on v5e/v6e)."""
    B, n_views, C, HW = feat_views.shape
    nvox = coord_cf.shape[2]
    tv = _pick_tile(nvox, tile_vox)
    proj_smem = proj_matricies.astype(jnp.float32).reshape(-1)   # (B*nv*12,)
    kern = functools.partial(_unproject_kernel, n_views=n_views, H=H, W=W)
    return pl.pallas_call(
        kern,
        out_shape=jax.ShapeDtypeStruct((B, C, nvox), jnp.float32),
        grid_spec=pltpu.PrefetchScalarGridSpec(
            num_scalar_prefetch=0,
            grid=(B, nvox // tv, n_views),
            in_specs=[
                pl.BlockSpec(memory_space=pltpu.MemorySpace.SMEM),
                pl.BlockSpec((1, 1, C, HW), lambda b, t, v: (b, v, 0, 0)),
                pl.BlockSpec((1, 3, tv), lambda b, t, v: (b, 0, t)),
            ],
            out_specs=pl.BlockSpec((1, C, tv), lambda b, t, v: (b, 0, t)),
            scratch_shapes=[pltpu.VMEM((C, tv), jnp.float32)],
        ),
        compiler_params=pltpu.CompilerParams(
            dimension_semantics=("parallel", "parallel", "arbitrary")),
    )(proj_smem, feat_views, coord_cf)


# ---------------------------------------------------------------------------
# Kernel 3a: V2V stand-in (pointwise 32->32 relu, 32->J) fused with an ONLINE
# softmax soft-argmax over a tiled voxel axis
# (op.integrate_tensor_3d_with_coordinates, softmax=True).
# Outputs: raw scores per tile, keypoints, and per-row (max, 1/sum) stats.
# ---------------------------------------------------------------------------
def _v2v_scores_kernel(vol_ref, coord_ref, w1_ref, b1_ref, w2_ref, b2_ref,
                       s_ref, kp_ref, m_ref, linv_ref,
                       m_sc, l_sc, r_sc, *, multiplier):
    t = pl.program_id(1)

    @pl.when(t == 0)
    def _():
        m_sc[...] = jnp.full_like(m_sc, -jnp.inf)
        l_sc[...] = jnp.zeros_like(l_sc)
        r_sc[...] = jnp.zeros_like(r_sc)

    x = vol_ref[0]                                                  # (C, Tv)
    h = jnp.dot(w1_ref[...], x, preferred_element_type=jnp.float32) + b1_ref[...]
    h = jnp.maximum(h, 0.0)
    s = (jnp.dot(w2_ref[...], h, preferred_element_type=jnp.float32)
         + b2_ref[...]) * multiplier                                # (J, Tv)
    s_ref[0] = s

    m_prev = m_sc[...]                                              # (J, 1)
    m_new = jnp.maximum(m_prev, jnp.max(s, axis=-1, keepdims=True))
    alpha = jnp.exp(m_prev - m_new)                                 # (J, 1)
    e = jnp.exp(s - m_new)                                          # (J, Tv)
    l_sc[...] = alpha * l_sc[...] + jnp.sum(e, axis=-1, keepdims=True)
    coord = coord_ref[0]                                            # (3, Tv)
    # soft-argmax numerator as an MXU matmul (contract Tv of both): (J, 3)
    r_sc[...] = alpha * r_sc[...] + lax.dot_general(
        e, coord, (((1,), (1,)), ((), ())), preferred_element_type=jnp.float32)
    m_sc[...] = m_new

    @pl.when(t == pl.num_programs(1) - 1)
    def _():
        inv_l = 1.0 / l_sc[...]            # J exact divides (tiny)
        kp_ref[0] = r_sc[...] * inv_l      # (J, 3)
        m_ref[0] = m_sc[...]
        linv_ref[0] = inv_l


# Kernel 3b: second sweep — normalize the stored scores into probabilities.
def _softmax_norm_kernel(s_ref, m_ref, linv_ref, p_ref):
    p_ref[0] = jnp.exp(s_ref[0] - m_ref[0]) * linv_ref[0]


def v2v_integrate(volumes_cf, coord_cf, w1, b1, w2, b2, multiplier,
                  *, tile_vox=8192):
    """volumes_cf: (B,C,Nvox), coord_cf: (B,3,Nvox) -> ((B,J,3), (B,J,Nvox))."""
    B, C, nvox = volumes_cf.shape
    J = w2.shape[0]
    tv = _pick_tile(nvox, tile_vox)
    T = nvox // tv
    kern = functools.partial(_v2v_scores_kernel, multiplier=float(multiplier))
    scores, kp, m, linv = pl.pallas_call(
        kern,
        out_shape=(jax.ShapeDtypeStruct((B, J, nvox), jnp.float32),
                   jax.ShapeDtypeStruct((B, J, 3), jnp.float32),
                   jax.ShapeDtypeStruct((B, J, 1), jnp.float32),
                   jax.ShapeDtypeStruct((B, J, 1), jnp.float32)),
        grid_spec=pltpu.PrefetchScalarGridSpec(
            num_scalar_prefetch=0,
            grid=(B, T),
            in_specs=[
                pl.BlockSpec((1, C, tv), lambda b, t: (b, 0, t)),
                pl.BlockSpec((1, 3, tv), lambda b, t: (b, 0, t)),
                pl.BlockSpec((C, C), lambda b, t: (0, 0)),
                pl.BlockSpec((C, 1), lambda b, t: (0, 0)),
                pl.BlockSpec((J, C), lambda b, t: (0, 0)),
                pl.BlockSpec((J, 1), lambda b, t: (0, 0)),
            ],
            out_specs=(pl.BlockSpec((1, J, tv), lambda b, t: (b, 0, t)),
                       pl.BlockSpec((1, J, 3), lambda b, t: (b, 0, 0)),
                       pl.BlockSpec((1, J, 1), lambda b, t: (b, 0, 0)),
                       pl.BlockSpec((1, J, 1), lambda b, t: (b, 0, 0))),
            scratch_shapes=[pltpu.VMEM((J, 1), jnp.float32),
                            pltpu.VMEM((J, 1), jnp.float32),
                            pltpu.VMEM((J, 3), jnp.float32)],
        ),
        compiler_params=pltpu.CompilerParams(
            dimension_semantics=("parallel", "arbitrary")),
    )(volumes_cf, coord_cf, w1, b1, w2, b2)

    probs = pl.pallas_call(
        _softmax_norm_kernel,
        out_shape=jax.ShapeDtypeStruct((B, J, nvox), jnp.float32),
        grid_spec=pltpu.PrefetchScalarGridSpec(
            num_scalar_prefetch=0,
            grid=(B, T),
            in_specs=[
                pl.BlockSpec((1, J, tv), lambda b, t: (b, 0, t)),
                pl.BlockSpec((1, J, 1), lambda b, t: (b, 0, 0)),
                pl.BlockSpec((1, J, 1), lambda b, t: (b, 0, 0)),
            ],
            out_specs=pl.BlockSpec((1, J, tv), lambda b, t: (b, 0, t)),
        ),
        compiler_params=pltpu.CompilerParams(
            dimension_semantics=("parallel", "parallel")),
    )(scores, m, linv)

    return kp, probs


# ---------------------------------------------------------------------------
# Parameter init + model
# ---------------------------------------------------------------------------
def _init_linear_cf(key, cin, cout):
    """Channels-first weights: W (cout, cin), b (cout, 1)."""
    kw, kb = jax.random.split(key)
    w = jax.random.normal(kw, (cout, cin), jnp.float32) / np.sqrt(cin)
    b = 0.01 * jax.random.normal(kb, (cout, 1), jnp.float32)
    return w, b


class VolumetricTriangulationNetPallas:
    def __init__(self, num_joints=17, volume_size=8, cuboid_side=50.0,
                 volume_multiplier=1.0, volume_softmax=True, kind="coco",
                 volume_aggregation_method="sum"):
        self.num_joints = num_joints
        self.volume_size = volume_size
        self.cuboid_side = cuboid_side
        self.volume_multiplier = volume_multiplier
        self.volume_softmax = volume_softmax
        self.kind = kind
        self.volume_aggregation_method = volume_aggregation_method
        self.use_gt_pelvis = False
        self.training = False  # eval mode -> theta = 0.0 (identity rotation)

        keys = jax.random.split(jax.random.fold_in(jax.random.PRNGKey(0), 7), 4)
        # TODO(synk): full pose_resnet backbone not reimplemented; stand-in is a
        # stride-4 subsample + pointwise stem (3->256 relu). The reference's
        # heatmap head (256->J) is dead work in this forward and is dropped.
        self.w_stem, self.b_stem = _init_linear_cf(keys[0], 3, 256)
        # process_features: nn.Conv2d(256, 32, 1)
        self.w_proc, self.b_proc = _init_linear_cf(keys[1], 256, 32)
        # TODO(synk): V2VModel encoder-decoder (3D convs + skips) stood in by
        # two pointwise 3D convs (32->32 relu, 32->num_joints).
        self.w_v2v1, self.b_v2v1 = _init_linear_cf(keys[2], 32, 32)
        self.w_v2v2, self.b_v2v2 = _init_linear_cf(keys[3], 32, num_joints)

    def forward(self, images, proj_matricies, batch):
        batch_size, n_views = images.shape[:2]
        V = self.volume_size
        J = self.num_joints

        # ----- backbone + process_features (fused Pallas pointwise chain) -----
        imgs = images.reshape(-1, *images.shape[2:])        # (N, 3, H, W) NCHW
        # TODO(synk): fold the stride-4 subsample into the kernel (Element
        # index_map) at real resolutions; here it is a cheap wrapper slice.
        x = imgs[:, :, ::4, ::4]
        N, Cimg, Hh, Wh = x.shape
        x_flat = x.reshape(N, Cimg, Hh * Wh)                # channels-first, no pad
        feat_cf = fused_backbone(x_flat, self.w_stem, self.b_stem,
                                 self.w_proc, self.b_proc)  # (N, 32, Hh*Wh) f32
        features = feat_cf.reshape(batch_size, n_views, 32, Hh, Wh)
        vol_confidences = None  # aggregation method does not start with 'conf'

        # ----- pelvis-centred cuboid + coordinate volume (glue) -----
        # TODO(synk): Camera.update_after_resize not reimplemented; proj_matricies
        # are assumed to already be expressed in heatmap pixel coordinates.
        if self.use_gt_pelvis:
            keypoints_3d = batch["keypoints_3d"]
        else:
            keypoints_3d = batch["pred_keypoints_3d"]       # (B, K, 3)
        if self.kind == "coco":
            base_points = (keypoints_3d[:, 11, :3] + keypoints_3d[:, 12, :3]) / 2
        else:  # mpii
            base_points = keypoints_3d[:, 6, :3]
        sides = jnp.array([self.cuboid_side] * 3, jnp.float32)
        positions = base_points - sides / 2
        pos_np = np.asarray(positions)
        cuboids = [{"position": pos_np[b], "sides": np.asarray(sides)}
                   for b in range(batch_size)]
        g = jnp.arange(V, dtype=jnp.float32)
        xxx, yyy, zzz = jnp.meshgrid(g, g, g, indexing="ij")
        grid = jnp.stack([xxx, yyy, zzz], axis=-1)          # (V, V, V, 3)
        step = sides / (V - 1)
        coord_volumes = positions[:, None, None, None, :] + step * grid[None]
        # eval mode: theta = 0.0 -> rotate_coord_volume is the identity.
        # TODO(synk): transfer_cmu_to_human36m permutation branch not implemented.
        grid_cf = grid.reshape(-1, 3).T                     # (3, V^3)
        coord_cf = positions[:, :, None] + step[None, :, None] * grid_cf[None]

        # ----- unproject features into the volume (views summed via grid axis) -----
        feat_views = feat_cf.reshape(batch_size, n_views, 32, Hh * Wh)
        feat_views = feat_views.astype(jnp.bfloat16)        # halve DMA/VMEM
        volumes_cf = unproject_volumes(proj_matricies, feat_views, coord_cf,
                                       Hh, Wh, tile_vox=512)  # (B, 32, V^3)

        # ----- V2V stand-in + online-softmax soft-argmax (tiled voxel axis) -----
        # TODO(synk): non-softmax integration path (volume_softmax=False) not
        # implemented.
        assert self.volume_softmax
        vol_keypoints_3d, soft_vol = v2v_integrate(
            volumes_cf, coord_cf, self.w_v2v1, self.b_v2v1,
            self.w_v2v2, self.b_v2v2, self.volume_multiplier, tile_vox=8192)
        volumes = soft_vol.reshape(batch_size, J, V, V, V)

        return (vol_keypoints_3d, features, volumes, vol_confidences,
                cuboids, coord_volumes, base_points)


# ---------------------------------------------------------------------------
# Deterministic synthetic cameras (already in heatmap pixel coordinates)
# ---------------------------------------------------------------------------
def make_projection_matrices(B, n_views, f=23.0, c=3.5, dist=200.0):
    K = np.array([[f, 0.0, c], [0.0, f, c], [0.0, 0.0, 1.0]], np.float64)
    Ps = []
    for v in range(n_views):
        a = 0.4 * v
        R = np.array([[np.cos(a), 0.0, np.sin(a)],
                      [0.0, 1.0, 0.0],
                      [-np.sin(a), 0.0, np.cos(a)]], np.float64)
        t = np.array([[0.0], [0.0], [dist]], np.float64)
        Ps.append(K @ np.concatenate([R, t], axis=1))
    P = np.stack(Ps, axis=0).astype(np.float32)             # (n_views, 3, 4)
    P = np.broadcast_to(P[None], (B, n_views, 3, 4)).copy()
    return jnp.asarray(P)


if __name__ == "__main__":
    key = jax.random.PRNGKey(0)
    k_img, k_kp = jax.random.split(key)

    B, n_views, J, V = 2, 2, 17, 8
    images = jax.random.normal(k_img, (B, n_views, 3, 32, 32), jnp.float32)
    pred_keypoints_3d = 10.0 * jax.random.normal(k_kp, (B, J, 3), jnp.float32)
    proj_matricies = make_projection_matrices(B, n_views)

    model = VolumetricTriangulationNetPallas(num_joints=J, volume_size=V)
    outs = model.forward(images, proj_matricies,
                         {"pred_keypoints_3d": pred_keypoints_3d})
    (vol_keypoints_3d, features, volumes, vol_confidences,
     cuboids, coord_volumes, base_points) = outs

    jax.block_until_ready((vol_keypoints_3d, features, volumes,
                           coord_volumes, base_points))

    assert vol_keypoints_3d.shape == (B, J, 3)
    assert features.shape == (B, n_views, 32, 8, 8)
    assert volumes.shape == (B, J, V, V, V)
    assert coord_volumes.shape == (B, V, V, V, 3)
    assert base_points.shape == (B, 3)
    assert vol_confidences is None
    assert len(cuboids) == B
    assert bool(jnp.all(jnp.isfinite(vol_keypoints_3d)))
    assert bool(jnp.all(jnp.isfinite(volumes)))
    # softmax volumes must sum to 1 over the voxel axis
    s = jnp.sum(volumes.reshape(B, J, -1), axis=-1)
    assert bool(jnp.all(jnp.abs(s - 1.0) < 1e-3))

    print("KERNEL_OK")
</pallas_src>

<mosaic_0001>
module attributes {stable_mosaic.version = 11 : i64} {
  func.func @_fused_backbone_kernel(%arg0: i32, %arg1: i32, %arg2: memref<1x3x64xf32, #tpu.memory_space<vmem>>, %arg3: memref<256x3xf32, #tpu.memory_space<vmem>>, %arg4: memref<256x1xf32, #tpu.memory_space<vmem>>, %arg5: memref<32x256xf32, #tpu.memory_space<vmem>>, %arg6: memref<32x1xf32, #tpu.memory_space<vmem>>, %arg7: memref<1x32x64xf32, #tpu.memory_space<vmem>>) attributes {dimension_semantics = [#tpu.dimension_semantics<parallel>, #tpu.dimension_semantics<parallel>], iteration_bounds = array<i64: 4, 1>, scalar_prefetch = 0 : i64, scratch_operands = 0 : i64, tpu.core_type = #tpu.core_type<tc>, window_params = [{transform_indices = @transform_0, window_bounds = array<i64: 1, 3, 64>}, {pipeline_mode = #tpu.pipeline_mode<synchronous>, transform_indices = @transform_1, window_bounds = array<i64: 256, 3>}, {pipeline_mode = #tpu.pipeline_mode<synchronous>, transform_indices = @transform_2, window_bounds = array<i64: 256, 1>}, {pipeline_mode = #tpu.pipeline_mode<synchronous>, transform_indices = @transform_3, window_bounds = array<i64: 32, 256>}, {pipeline_mode = #tpu.pipeline_mode<synchronous>, transform_indices = @transform_4, window_bounds = array<i64: 32, 1>}, {transform_indices = @transform_5, window_bounds = array<i64: 1, 32, 64>}]} {
    %c0 = arith.constant 0 : index
    %c0_0 = arith.constant 0 : index
    %c0_1 = arith.constant 0 : index
    %0 = vector.load %arg2[%c0, %c0_0, %c0_1] : memref<1x3x64xf32, #tpu.memory_space<vmem>>, vector<1x3x64xf32>
    %1 = vector.shape_cast %0 : vector<1x3x64xf32> to vector<3x64xf32>
    %c0_2 = arith.constant 0 : index
    %c0_3 = arith.constant 0 : index
    %2 = vector.load %arg3[%c0_2, %c0_3] : memref<256x3xf32, #tpu.memory_space<vmem>>, vector<256x3xf32>
    %c0_4 = arith.constant 0 : index
    %c0_5 = arith.constant 0 : index
    %3 = vector.load %arg4[%c0_4, %c0_5] : memref<256x1xf32, #tpu.memory_space<vmem>>, vector<256x1xf32>
    %4 = vector.extract_strided_slice %2 {offsets = [0, 0], sizes = [256, 1], strides = [1, 1]} : vector<256x3xf32> to vector<256x1xf32>
    %5 = vector.extract_strided_slice %1 {offsets = [0, 0], sizes = [1, 64], strides = [1, 1]} : vector<3x64xf32> to vector<1x64xf32>
    %6 = vector.broadcast %4 : vector<256x1xf32> to vector<256x64xf32>
    %7 = vector.broadcast %5 : vector<1x64xf32> to vector<256x64xf32>
    %8 = arith.mulf %6, %7 : vector<256x64xf32>
    %9 = vector.broadcast %3 : vector<256x1xf32> to vector<256x64xf32>
    %10 = arith.addf %9, %8 : vector<256x64xf32>
    %11 = vector.extract_strided_slice %2 {offsets = [0, 1], sizes = [256, 1], strides = [1, 1]} : vector<256x3xf32> to vector<256x1xf32>
    %12 = vector.extract_strided_slice %1 {offsets = [1, 0], sizes = [1, 64], strides = [1, 1]} : vector<3x64xf32> to vector<1x64xf32>
    %13 = vector.broadcast %11 : vector<256x1xf32> to vector<256x64xf32>
    %14 = vector.broadcast %12 : vector<1x64xf32> to vector<256x64xf32>
    %15 = arith.mulf %13, %14 : vector<256x64xf32>
    %16 = arith.addf %10, %15 : vector<256x64xf32>
    %17 = vector.extract_strided_slice %2 {offsets = [0, 2], sizes = [256, 1], strides = [1, 1]} : vector<256x3xf32> to vector<256x1xf32>
    %18 = vector.extract_strided_slice %1 {offsets = [2, 0], sizes = [1, 64], strides = [1, 1]} : vector<3x64xf32> to vector<1x64xf32>
    %19 = vector.broadcast %17 : vector<256x1xf32> to vector<256x64xf32>
    %20 = vector.broadcast %18 : vector<1x64xf32> to vector<256x64xf32>
    %21 = arith.mulf %19, %20 : vector<256x64xf32>
    %22 = arith.addf %16, %21 : vector<256x64xf32>
    %cst = arith.constant 0.000000e+00 : f32
    %23 = vector.broadcast %cst : f32 to vector<256x64xf32>
    %24 = arith.maximumf %22, %23 : vector<256x64xf32>
    %c0_6 = arith.constant 0 : index
    %c0_7 = arith.constant 0 : index
    %25 = vector.load %arg5[%c0_6, %c0_7] : memref<32x256xf32, #tpu.memory_space<vmem>>, vector<32x256xf32>
    %26 = arith.truncf %25 : vector<32x256xf32> to vector<32x256xbf16>
    %27 = arith.truncf %24 : vector<256x64xf32> to vector<256x64xbf16>
    %cst_8 = arith.constant dense<0.000000e+00> : vector<32x64xf32>
    %28 = tpu.matmul %26, %27, %cst_8 {dimension_numbers = #tpu.dot_dimension_numbers<[1], [0], [0], [1], [0, 0, 1, 1], [], []>} : vector<32x256xbf16>, vector<256x64xbf16>, vector<32x64xf32> -> vector<32x64xf32>
    %c0_9 = arith.constant 0 : index
    %c0_10 = arith.constant 0 : index
    %29 = vector.load %arg6[%c0_9, %c0_10] : memref<32x1xf32, #tpu.memory_space<vmem>>, vector<32x1xf32>
    %30 = vector.broadcast %29 : vector<32x1xf32> to vector<32x64xf32>
    %31 = arith.addf %28, %30 : vector<32x64xf32>
    %c0_11 = arith.constant 0 : index
    %c0_12 = arith.constant 0 : index
    %c0_13 = arith.constant 0 : index
    %32 = vector.load %arg7[%c0_11, %c0_12, %c0_13] : memref<1x32x64xf32, #tpu.memory_space<vmem>>, vector<1x32x64xf32>
    %33 = vector.shape_cast %32 : vector<1x32x64xf32> to vector<32x64xf32>
    %34 = vector.shape_cast %31 : vector<32x64xf32> to vector<1x32x64xf32>
    tpu.vector_store %arg7[%c0_11, %c0_12, %c0_13], %34 {strides = array<i32>} : memref<1x32x64xf32, #tpu.memory_space<vmem>>, vector<1x32x64xf32>,
    return
  }
  func.func @transform_0(%arg0: i32, %arg1: i32) -> (i32, i32, i32) {
    %c0_i32 = arith.constant 0 : i32
    %c0_i32_0 = arith.constant 0 : i32
    return %arg0, %c0_i32, %arg1 : i32, i32, i32
  }
  func.func @transform_1(%arg0: i32, %arg1: i32) -> (i32, i32) {
    %c0_i32 = arith.constant 0 : i32
    %c0_i32_0 = arith.constant 0 : i32
    %c0_i32_1 = arith.constant 0 : i32
    return %c0_i32, %c0_i32_0 : i32, i32
  }
  func.func @transform_2(%arg0: i32, %arg1: i32) -> (i32, i32) {
    %c0_i32 = arith.constant 0 : i32
    %c0_i32_0 = arith.constant 0 : i32
    %c0_i32_1 = arith.constant 0 : i32
    return %c0_i32, %c0_i32_0 : i32, i32
  }
  func.func @transform_3(%arg0: i32, %arg1: i32) -> (i32, i32) {
    %c0_i32 = arith.constant 0 : i32
    %c0_i32_0 = arith.constant 0 : i32
    %c0_i32_1 = arith.constant 0 : i32
    return %c0_i32, %c0_i32_0 : i32, i32
  }
  func.func @transform_4(%arg0: i32, %arg1: i32) -> (i32, i32) {
    %c0_i32 = arith.constant 0 : i32
    %c0_i32_0 = arith.constant 0 : i32
    %c0_i32_1 = arith.constant 0 : i32
    return %c0_i32, %c0_i32_0 : i32, i32
  }
  func.func @transform_5(%arg0: i32, %arg1: i32) -> (i32, i32, i32) {
    %c0_i32 = arith.constant 0 : i32
    %c0_i32_0 = arith.constant 0 : i32
    return %arg0, %c0_i32, %arg1 : i32, i32, i32
  }
}

</mosaic_0001>

<llo_original>
// kernel: tpu_custom_call.1
$region0: #{tpu_custom_call.1}
  #allocation0 [shape = 'u32[]', space=smem, size = 0x4, offset = 0x4, fixed_abs, tag = 'smem constant byte address 0x4 - core index']
  #allocation1 [shape = 'u32[72,128]{1,0:T(1,128)}', space=vmem, size = 0x9000, scoped, tag = 'internal scratch']
  %s0 = inlined_call_operand.vmem [shape: f32[4,3,64], index: 0, kind: input, shape index: {}]
  %s1 = inlined_call_operand.vmem [shape: f32[256,3], index: 1, kind: input, shape index: {}]
  %s2 = inlined_call_operand.vmem [shape: f32[256,1], index: 2, kind: input, shape index: {}]
  %s3 = inlined_call_operand.vmem [shape: f32[32,256], index: 3, kind: input, shape index: {}]
  %s4 = inlined_call_operand.vmem [shape: f32[32,1], index: 4, kind: input, shape index: {}]
  %s5 = inlined_call_operand.hbm [shape: f32[4,32,64], index: 5, kind: output, shape index: {}]
  %s6 = sld [smem:[#allocation0]]
  $region53: #{tpu_custom_call.1} parent=0
    _
  %s8 = ssub.s32 1, %s6
  %s9 = scalar_select 0, %s8, %s6
  $region1: #{tpu_custom_call.1} parent=0
    #allocation2 [shape = 'u8[32768]{0}', space=vmem, size = 0x8000, scoped, tag = 'output window, operand 0']
    #allocation3 [shape = 's32[2]{0}', space=sflag, size = 0x8, scoped, tag = 'scoped memory for tpu_custom_call.1']
    %10 = vsyncpa [#allocation3], 0
    %s11 = scalar_lea.sflag [#allocation3], 1
    %12 = vsyncpa %s11, 0
    loop: start=0, step=1, limit=6
    $region2: #{tpu_custom_call.1} parent=1 // loop_pre_header
      _
    $region3: #{tpu_custom_call.1} parent=1 // loop_header
      %s14 = sphi 0, %s18
      %p15 = scmp.ge.s32.totalorder %s14, 6
      %s21 = sphi 0, %s33
      %s22 = sphi 0, %s29
      %s23 = sphi 0, %s21
      %s24 = sphi 0, %s22
      %s25 = sphi 0, %s23
      %s26 = sphi 0, %s24
      %s38 = sphi 0, %s40
      %s41 = sphi 0, %s38
      %s42 = sphi 0, %s41
      %s58 = sphi 0, %s42
      %s62 = sphi 0, %s62
      %s64 = sphi 0, %s62
      %s65 = sphi 0, %s64
      %s79 = sphi 0, %s65
      %s83 = sphi 0, %s83
      %s85 = sphi 0, %s83
      %s86 = sphi 0, %s85
      %s100 = sphi 0, %s86
      %s104 = sphi 0, %s104
      %s106 = sphi 0, %s104
      %s107 = sphi 0, %s106
      %s121 = sphi 0, %s107
      %s125 = sphi 0, %s125
      %s127 = sphi 0, %s125
      %s128 = sphi 0, %s127
      %s142 = sphi 0, %s128
      %s150 = sphi 0, %s152
      %s153 = sphi 0, %s150
      %s154 = sphi 0, %s153
      %s170 = sphi 0, %s154
    $region4: #{tpu_custom_call.1} parent=1 // loop_header_branch
      %17 = sbr.rel (%p15) target = $region8
    $region5: #{tpu_custom_call.1} parent=1 // loop_body
      %s19 = ssub.s32 %s14, 1
      %s20 = ssub.s32 %s14, 2
      %s27 = sadd.s32 1, %s22
      %p28 = scmp.ge.s32.totalorder %s27, 1
      %s29 = scalar_select %p28, 0, %s27
      %s30 = sadd.s32 1, %s21
      %s31 = scalar_select %p28, %s30, %s21
      %p32 = scmp.ge.s32.totalorder %s31, 4
      %s33 = scalar_select %p32, 0, %s31
      %s34 = ssub.s32 %s21, %s33
      %s35 = ssub.s32 %s22, %s29
      %s36 = sor.u32 %s34, %s35
      %p37 = scmp.eq.s32.totalorder %s36, 0
      %s39 = sadd.s32 %s38, 1
      %s40 = scalar_select %p37, %s38, %s39
      %p43 = pneg %p37
      %p44 = scmp.eq.s32.totalorder %s14, 3
      %p45 = por %p43, %p44
      %p46 = scmp.ne.s32.totalorder %s38, %s41
      %p47 = scmp.eq.s32.totalorder %s14, 0
      %p48 = por %p46, %p47
      %p49 = scmp.ne.s32.totalorder %s38, %s41
      %p50 = scmp.eq.s32.totalorder %s19, 3
      %p51 = por %p49, %p50
      %p52 = scmp.ne.s32.totalorder %s41, %s42
      %p53 = scmp.eq.s32.totalorder %s19, 0
      %p54 = por %p52, %p53
      %p55 = scmp.ne.s32.totalorder %s41, %s42
      %p56 = scmp.eq.s32.totalorder %s20, 3
      %p57 = por %p55, %p56
      %p59 = scmp.ne.s32.totalorder %s42, %s58
      %p60 = scmp.eq.s32.totalorder %s20, 0
      %p61 = por %p59, %p60
      %s63 = sadd.s32 %s62, 1
      %p66 = scmp.eq.s32.totalorder %s14, 3
      %p67 = scmp.ne.s32.totalorder %s62, %s64
      %p68 = scmp.eq.s32.totalorder %s14, 0
      %p69 = por %p67, %p68
      %p70 = scmp.ne.s32.totalorder %s62, %s64
      %p71 = scmp.eq.s32.totalorder %s19, 3
      %p72 = por %p70, %p71
      %p73 = scmp.ne.s32.totalorder %s64, %s65
      %p74 = scmp.eq.s32.totalorder %s19, 0
      %p75 = por %p73, %p74
      %p76 = scmp.ne.s32.totalorder %s64, %s65
      %p77 = scmp.eq.s32.totalorder %s20, 3
      %p78 = por %p76, %p77
      %p80 = scmp.ne.s32.totalorder %s65, %s79
      %p81 = scmp.eq.s32.totalorder %s20, 0
      %p82 = por %p80, %p81
      %s84 = sadd.s32 %s83, 1
      %p87 = scmp.eq.s32.totalorder %s14, 3
      %p88 = scmp.ne.s32.totalorder %s83, %s85
      %p89 = scmp.eq.s32.totalorder %s14, 0
      %p90 = por %p88, %p89
      %p91 = scmp.ne.s32.totalorder %s83, %s85
      %p92 = scmp.eq.s32.totalorder %s19, 3
      %p93 = por %p91, %p92
      %p94 = scmp.ne.s32.totalorder %s85, %s86
      %p95 = scmp.eq.s32.totalorder %s19, 0
      %p96 = por %p94, %p95
      %p97 = scmp.ne.s32.totalorder %s85, %s86
      %p98 = scmp.eq.s32.totalorder %s20, 3
      %p99 = por %p97, %p98
      %p101 = scmp.ne.s32.totalorder %s86, %s100
      %p102 = scmp.eq.s32.totalorder %s20, 0
      %p103 = por %p101, %p102
      %s105 = sadd.s32 %s104, 1
      %p108 = scmp.eq.s32.totalorder %s14, 3
      %p109 = scmp.ne.s32.totalorder %s104, %s106
      %p110 = scmp.eq.s32.totalorder %s14, 0
      %p111 = por %p109, %p110
      %p112 = scmp.ne.s32.totalorder %s104, %s106
      %p113 = scmp.eq.s32.totalorder %s19, 3
      %p114 = por %p112, %p113
      %p115 = scmp.ne.s32.totalorder %s106, %s107
      %p116 = scmp.eq.s32.totalorder %s19, 0
      %p117 = por %p115, %p116
      %p118 = scmp.ne.s32.totalorder %s106, %s107
      %p119 = scmp.eq.s32.totalorder %s20, 3
      %p120 = por %p118, %p119
      %p122 = scmp.ne.s32.totalorder %s107, %s121
      %p123 = scmp.eq.s32.totalorder %s20, 0
      %p124 = por %p122, %p123
      %s126 = sadd.s32 %s125, 1
      %p129 = scmp.eq.s32.totalorder %s14, 3
      %p130 = scmp.ne.s32.totalorder %s125, %s127
      %p131 = scmp.eq.s32.totalorder %s14, 0
      %p132 = por %p130, %p131
      %p133 = scmp.ne.s32.totalorder %s125, %s127
      %p134 = scmp.eq.s32.totalorder %s19, 3
      %p135 = por %p133, %p134
      %p136 = scmp.ne.s32.totalorder %s127, %s128
      %p137 = scmp.eq.s32.totalorder %s19, 0
      %p138 = por %p136, %p137
      %p139 = scmp.ne.s32.totalorder %s127, %s128
      %p140 = scmp.eq.s32.totalorder %s20, 3
      %p141 = por %p139, %p140
      %p143 = scmp.ne.s32.totalorder %s128, %s142
      %p144 = scmp.eq.s32.totalorder %s20, 0
      %p145 = por %p143, %p144
      %s146 = ssub.s32 %s21, %s33
      %s147 = ssub.s32 %s22, %s29
      %s148 = sor.u32 %s146, %s147
      %p149 = scmp.eq.s32.totalorder %s148, 0
      %s151 = sadd.s32 %s150, 1
      %s152 = scalar_select %p149, %s150, %s151
      %p155 = pneg %p149
      %p156 = scmp.eq.s32.totalorder %s14, 3
      %p157 = por %p155, %p156
      %p158 = scmp.ne.s32.totalorder %s150, %s153
      %p159 = scmp.eq.s32.totalorder %s14, 0
      %p160 = por %p158, %p159
      %p161 = scmp.ne.s32.totalorder %s150, %s153
      %p162 = scmp.eq.s32.totalorder %s19, 3
      %p163 = por %p161, %p162
      %p164 = scmp.ne.s32.totalorder %s153, %s154
      %p165 = scmp.eq.s32.totalorder %s19, 0
      %p166 = por %p164, %p165
      %p167 = scmp.ne.s32.totalorder %s153, %s154
      %p168 = scmp.eq.s32.totalorder %s20, 3
      %p169 = por %p167, %p168
      %p171 = scmp.ne.s32.totalorder %s154, %s170
      %p172 = scmp.eq.s32.totalorder %s20, 0
      %p173 = por %p171, %p172
      %p174 = scmp.le.s32.totalorder 1, %s14
      %p175 = scmp.lt.s32.totalorder %s14, 5
      %p176 = pnand %p174, %p175
      %p177 = pneg %p176
      // Predicated region
      $region9: #{tpu_custom_call.1} parent=5 // pred_check
        _
      $region10: #{tpu_custom_call.1} parent=5 // pred_check_branch
        %179 = sbr.rel (%p176) target = $region12
      $region11: #{tpu_custom_call.1} parent=5 // pred_region
        %s180 = ssub.s32 %s14, 1
        // Predicated region
        $region13: #{tpu_custom_call.1} parent=11 // pred_check
          %p181 = pneg %p75
        $region14: #{tpu_custom_call.1} parent=11 // pred_check_branch
          %183 = sbr.rel (%p181) target = $region16
        $region15: #{tpu_custom_call.1} parent=11 // pred_region
          _
        $region16: #{tpu_custom_call.1} parent=11 // pred_fallthru
          _
        // Predicated region
        $region17: #{tpu_custom_call.1} parent=11 // pred_check
          %p184 = pneg %p96
        $region18: #{tpu_custom_call.1} parent=11 // pred_check_branch
          %186 = sbr.rel (%p184) target = $region20
        $region19: #{tpu_custom_call.1} parent=11 // pred_region
          _
        $region20: #{tpu_custom_call.1} parent=11 // pred_fallthru
          _
        // Predicated region
        $region21: #{tpu_custom_call.1} parent=11 // pred_check
          %p187 = pneg %p117
        $region22: #{tpu_custom_call.1} parent=11 // pred_check_branch
          %189 = sbr.rel (%p187) target = $region24
        $region23: #{tpu_custom_call.1} parent=11 // pred_region
          _
        $region24: #{tpu_custom_call.1} parent=11 // pred_fallthru
          _
        // Predicated region
        $region25: #{tpu_custom_call.1} parent=11 // pred_check
          %p190 = pneg %p138
        $region26: #{tpu_custom_call.1} parent=11 // pred_check_branch
          %192 = sbr.rel (%p190) target = $region28
        $region27: #{tpu_custom_call.1} parent=11 // pred_region
          _
        $region28: #{tpu_custom_call.1} parent=11 // pred_fallthru
          _
      $region12: #{tpu_custom_call.1} parent=5 // pred_fallthru
        _
      %p193 = scmp.lt.s32.totalorder %s14, 4
      // Predicated region
      $region29: #{tpu_custom_call.1} parent=5 // pred_check
        %p194 = pneg %p193
      $region30: #{tpu_custom_call.1} parent=5 // pred_check_branch
        %196 = sbr.rel (%p194) target = $region32
      $region31: #{tpu_custom_call.1} parent=5 // pred_region
        // Predicated region
        $region33: #{tpu_custom_call.1} parent=31 // pred_check
          %p197 = pneg %p48
        $region34: #{tpu_custom_call.1} parent=31 // pred_check_branch
          %199 = sbr.rel (%p197) target = $region36
        $region35: #{tpu_custom_call.1} parent=31 // pred_region
          %p200 = scmp.lt.s32.totalorder %s21, 3
          %s201 = scalar_select %p200, %s21, 3
          %p202 = scmp.lt.s32.totalorder %s22, 0
          %s203 = scalar_select %p202, %s22, 0
          %s204 = sadd.s32 %s203, %s201
          %s205 = smul.addr %s204, 4
          %s206 = scalar_lea.vmem %s0, %s205
        $region36: #{tpu_custom_call.1} parent=31 // pred_fallthru
          _
      $region32: #{tpu_custom_call.1} parent=5 // pred_fallthru
        _
      %p207 = scmp.le.s32.totalorder 1, %s14
      %p208 = scmp.lt.s32.totalorder %s14, 5
      %p209 = pnand %p207, %p208
      %p210 = pneg %p209
      // Predicated region
      $region37: #{tpu_custom_call.1} parent=5 // pred_check
        _
      $region38: #{tpu_custom_call.1} parent=5 // pred_check_branch
        %212 = sbr.rel (%p209) target = $region40
      $region39: #{tpu_custom_call.1} parent=5 // pred_region
        %s213 = ssub.s32 %s14, 1
        %p214 = scmp.lt.s32.totalorder %s23, 3
        %s215 = scalar_select %p214, %s23, 3
        %p216 = scmp.lt.s32.totalorder %s24, 0
        %s217 = scalar_select %p216, %s24, 0
        %s218 = sadd.s32 %s217, %s215
        %s219 = smul.addr %s218, 4
        %s220 = scalar_lea.vmem %s0, %s219
        %p221 = pneg %p54
        %p222 = pneg %p51
        %p223 = pneg %p75
        %p224 = pneg %p72
        %p225 = pneg %p96
        %p226 = pneg %p93
        %p227 = pneg %p117
        %p228 = pneg %p114
        %p229 = pneg %p138
        %p230 = pneg %p135
        %p231 = pneg %p166
        %p232 = pneg %p163
        %s233 = sand.u32 %s153, 1
        %s234 = scalar_lea.sflag [#allocation3], %s233
        %s235 = sand.u32 %s153, 1
        %s236 = smul.addr %s235, 32
        %s237 = scalar_lea.vmem [#allocation2], %s236
        %p238 = scmp.lt.s32.totalorder %s23, 3
        %s239 = scalar_select %p238, %s23, 3
        %p240 = scmp.lt.s32.totalorder %s24, 0
        %s241 = scalar_select %p240, %s24, 0
        %s242 = sadd.s32 %s241, %s239
        %s243 = smul.addr %s242, 4
        %s244 = scalar_lea.vmem %s0, %s243
        %v245 = vld [vmem:[%s244] sm:$0x7]
        %v246 = vld [vmem:[%s1] sm:$0xff]
        %v247 = vld [vmem:[%s1 + $0x8] sm:$0xff]
        %v248 = vld [vmem:[%s1 + $0x10] sm:$0xff]
        %v249 = vld [vmem:[%s1 + $0x18] sm:$0xff]
        %v250 = vld [vmem:[%s1 + $0x20] sm:$0xff]
        %v251 = vld [vmem:[%s1 + $0x28] sm:$0xff]
        %v252 = vld [vmem:[%s1 + $0x30] sm:$0xff]
        %v253 = vld [vmem:[%s1 + $0x38] sm:$0xff]
        %v254 = vld [vmem:[%s1 + $0x40] sm:$0xff]
        %v255 = vld [vmem:[%s1 + $0x48] sm:$0xff]
        %v256 = vld [vmem:[%s1 + $0x50] sm:$0xff]
        %v257 = vld [vmem:[%s1 + $0x58] sm:$0xff]
        %v258 = vld [vmem:[%s1 + $0x60] sm:$0xff]
        %v259 = vld [vmem:[%s1 + $0x68] sm:$0xff]
        %v260 = vld [vmem:[%s1 + $0x70] sm:$0xff]
        %v261 = vld [vmem:[%s1 + $0x78] sm:$0xff]
        %v262 = vld [vmem:[%s1 + $0x80] sm:$0xff]
        %v263 = vld [vmem:[%s1 + $0x88] sm:$0xff]
        %v264 = vld [vmem:[%s1 + $0x90] sm:$0xff]
        %v265 = vld [vmem:[%s1 + $0x98] sm:$0xff]
        %v266 = vld [vmem:[%s1 + $0xa0] sm:$0xff]
        %v267 = vld [vmem:[%s1 + $0xa8] sm:$0xff]
        %v268 = vld [vmem:[%s1 + $0xb0] sm:$0xff]
        %v269 = vld [vmem:[%s1 + $0xb8] sm:$0xff]
        %v270 = vld [vmem:[%s1 + $0xc0] sm:$0xff]
        %v271 = vld [vmem:[%s1 + $0xc8] sm:$0xff]
        %v272 = vld [vmem:[%s1 + $0xd0] sm:$0xff]
        %v273 = vld [vmem:[%s1 + $0xd8] sm:$0xff]
        %v274 = vld [vmem:[%s1 + $0xe0] sm:$0xff]
        %v275 = vld [vmem:[%s1 + $0xe8] sm:$0xff]
        %v276 = vld [vmem:[%s1 + $0xf0] sm:$0xff]
        %v277 = vld [vmem:[%s1 + $0xf8] sm:$0xff]
        %v278 = vld [vmem:[%s2] sm:$0xff]
        %v279 = vld [vmem:[%s2 + $0x8] sm:$0xff]
        %v280 = vld [vmem:[%s2 + $0x10] sm:$0xff]
        %v281 = vld [vmem:[%s2 + $0x18] sm:$0xff]
        %v282 = vld [vmem:[%s2 + $0x20] sm:$0xff]
        %v283 = vld [vmem:[%s2 + $0x28] sm:$0xff]
        %v284 = vld [vmem:[%s2 + $0x30] sm:$0xff]
        %v285 = vld [vmem:[%s2 + $0x38] sm:$0xff]
        %v286 = vld [vmem:[%s2 + $0x40] sm:$0xff]
        %v287 = vld [vmem:[%s2 + $0x48] sm:$0xff]
        %v288 = vld [vmem:[%s2 + $0x50] sm:$0xff]
        %v289 = vld [vmem:[%s2 + $0x58] sm:$0xff]
        %v290 = vld [vmem:[%s2 + $0x60] sm:$0xff]
        %v291 = vld [vmem:[%s2 + $0x68] sm:$0xff]
        %v292 = vld [vmem:[%s2 + $0x70] sm:$0xff]
        %v293 = vld [vmem:[%s2 + $0x78] sm:$0xff]
        %v294 = vld [vmem:[%s2 + $0x80] sm:$0xff]
        %v295 = vld [vmem:[%s2 + $0x88] sm:$0xff]
        %v296 = vld [vmem:[%s2 + $0x90] sm:$0xff]
        %v297 = vld [vmem:[%s2 + $0x98] sm:$0xff]
        %v298 = vld [vmem:[%s2 + $0xa0] sm:$0xff]
        %v299 = vld [vmem:[%s2 + $0xa8] sm:$0xff]
        %v300 = vld [vmem:[%s2 + $0xb0] sm:$0xff]
        %v301 = vld [vmem:[%s2 + $0xb8] sm:$0xff]
        %v302 = vld [vmem:[%s2 + $0xc0] sm:$0xff]
        %v303 = vld [vmem:[%s2 + $0xc8] sm:$0xff]
        %v304 = vld [vmem:[%s2 + $0xd0] sm:$0xff]
        %v305 = vld [vmem:[%s2 + $0xd8] sm:$0xff]
        %v306 = vld [vmem:[%s2 + $0xe0] sm:$0xff]
        %v307 = vld [vmem:[%s2 + $0xe8] sm:$0xff]
        %v308 = vld [vmem:[%s2 + $0xf0] sm:$0xff]
        %v309 = vld [vmem:[%s2 + $0xf8] sm:$0xff]
        %311 = vset.pattern.permute.xlu0 0
        %312 = vperm.xlu0 %311, %v246
        %v313 = vpop.permute.xlu0 %312
        %316 = vset.pattern.permute.xlu0 0
        %317 = vperm.xlu0 %316, %v247
        %v318 = vpop.permute.xlu0 %317
        %321 = vset.pattern.permute.xlu0 0
        %322 = vperm.xlu0 %321, %v248
        %v323 = vpop.permute.xlu0 %322
        %326 = vset.pattern.permute.xlu0 0
        %327 = vperm.xlu0 %326, %v249
        %v328 = vpop.permute.xlu0 %327
        %331 = vset.pattern.permute.xlu0 0
        %332 = vperm.xlu0 %331, %v250
        %v333 = vpop.permute.xlu0 %332
        %336 = vset.pattern.permute.xlu0 0
        %337 = vperm.xlu0 %336, %v251
        %v338 = vpop.permute.xlu0 %337
        %341 = vset.pattern.permute.xlu0 0
        %342 = vperm.xlu0 %341, %v252
        %v343 = vpop.permute.xlu0 %342
        %346 = vset.pattern.permute.xlu0 0
        %347 = vperm.xlu0 %346, %v253
        %v348 = vpop.permute.xlu0 %347
        %351 = vset.pattern.permute.xlu0 0
        %352 = vperm.xlu0 %351, %v254
        %v353 = vpop.permute.xlu0 %352
        %356 = vset.pattern.permute.xlu0 0
        %357 = vperm.xlu0 %356, %v255
        %v358 = vpop.permute.xlu0 %357
        %361 = vset.pattern.permute.xlu0 0
        %362 = vperm.xlu0 %361, %v256
        %v363 = vpop.permute.xlu0 %362
        %366 = vset.pattern.permute.xlu0 0
        %367 = vperm.xlu0 %366, %v257
        %v368 = vpop.permute.xlu0 %367
        %371 = vset.pattern.permute.xlu0 0
        %372 = vperm.xlu0 %371, %v258
        %v373 = vpop.permute.xlu0 %372
        %376 = vset.pattern.permute.xlu0 0
        %377 = vperm.xlu0 %376, %v259
        %v378 = vpop.permute.xlu0 %377
        %381 = vset.pattern.permute.xlu0 0
        %382 = vperm.xlu0 %381, %v260
        %v383 = vpop.permute.xlu0 %382
        %386 = vset.pattern.permute.xlu0 0
        %387 = vperm.xlu0 %386, %v261
        %v388 = vpop.permute.xlu0 %387
        %391 = vset.pattern.permute.xlu0 0
        %392 = vperm.xlu0 %391, %v262
        %v393 = vpop.permute.xlu0 %392
        %396 = vset.pattern.permute.xlu0 0
        %397 = vperm.xlu0 %396, %v263
        %v398 = vpop.permute.xlu0 %397
        %401 = vset.pattern.permute.xlu0 0
        %402 = vperm.xlu0 %401, %v264
        %v403 = vpop.permute.xlu0 %402
        %406 = vset.pattern.permute.xlu0 0
        %407 = vperm.xlu0 %406, %v265
        %v408 = vpop.permute.xlu0 %407
        %411 = vset.pattern.permute.xlu0 0
        %412 = vperm.xlu0 %411, %v266
        %v413 = vpop.permute.xlu0 %412
        %416 = vset.pattern.permute.xlu0 0
        %417 = vperm.xlu0 %416, %v267
        %v418 = vpop.permute.xlu0 %417
        %421 = vset.pattern.permute.xlu0 0
        %422 = vperm.xlu0 %421, %v268
        %v423 = vpop.permute.xlu0 %422
        %426 = vset.pattern.permute.xlu0 0
        %427 = vperm.xlu0 %426, %v269
        %v428 = vpop.permute.xlu0 %427
        %431 = vset.pattern.permute.xlu0 0
        %432 = vperm.xlu0 %431, %v270
        %v433 = vpop.permute.xlu0 %432
        %436 = vset.pattern.permute.xlu0 0
        %437 = vperm.xlu0 %436, %v271
        %v438 = vpop.permute.xlu0 %437
        %441 = vset.pattern.permute.xlu0 0
        %442 = vperm.xlu0 %441, %v272
        %v443 = vpop.permute.xlu0 %442
        %446 = vset.pattern.permute.xlu0 0
        %447 = vperm.xlu0 %446, %v273
        %v448 = vpop.permute.xlu0 %447
        %451 = vset.pattern.permute.xlu0 0
        %452 = vperm.xlu0 %451, %v274
        %v453 = vpop.permute.xlu0 %452
        %456 = vset.pattern.permute.xlu0 0
        %457 = vperm.xlu0 %456, %v275
        %v458 = vpop.permute.xlu0 %457
        %461 = vset.pattern.permute.xlu0 0
        %462 = vperm.xlu0 %461, %v276
        %v463 = vpop.permute.xlu0 %462
        %466 = vset.pattern.permute.xlu0 0
        %467 = vperm.xlu0 %466, %v277
        %v468 = vpop.permute.xlu0 %467
        %v470 = vperm.slane %v245, 0
        %v471 = vmul.f32 %v313, %v470
        %v472 = vmul.f32 %v318, %v470
        %v473 = vmul.f32 %v323, %v470
        %v474 = vmul.f32 %v328, %v470
        %v475 = vmul.f32 %v333, %v470
        %v476 = vmul.f32 %v338, %v470
        %v477 = vmul.f32 %v343, %v470
        %v478 = vmul.f32 %v348, %v470
        %v479 = vmul.f32 %v353, %v470
        %v480 = vmul.f32 %v358, %v470
        %v481 = vmul.f32 %v363, %v470
        %v482 = vmul.f32 %v368, %v470
        %v483 = vmul.f32 %v373, %v470
        %v484 = vmul.f32 %v378, %v470
        %v485 = vmul.f32 %v383, %v470
        %v486 = vmul.f32 %v388, %v470
        %v487 = vmul.f32 %v393, %v470
        %v488 = vmul.f32 %v398, %v470
        %v489 = vmul.f32 %v403, %v470
        %v490 = vmul.f32 %v408, %v470
        %v491 = vmul.f32 %v413, %v470
        %v492 = vmul.f32 %v418, %v470
        %v493 = vmul.f32 %v423, %v470
        %v494 = vmul.f32 %v428, %v470
        %v495 = vmul.f32 %v433, %v470
        %v496 = vmul.f32 %v438, %v470
        %v497 = vmul.f32 %v443, %v470
        %v498 = vmul.f32 %v448, %v470
        %v499 = vmul.f32 %v453, %v470
        %v500 = vmul.f32 %v458, %v470
        %v501 = vmul.f32 %v463, %v470
        %v502 = vmul.f32 %v468, %v470
        %504 = vset.pattern.permute.xlu0 0
        %505 = vperm.xlu0 %504, %v278
        %v506 = vpop.permute.xlu0 %505
        %509 = vset.pattern.permute.xlu0 0
        %510 = vperm.xlu0 %509, %v279
        %v511 = vpop.permute.xlu0 %510
        %514 = vset.pattern.permute.xlu0 0
        %515 = vperm.xlu0 %514, %v280
        %v516 = vpop.permute.xlu0 %515
        %519 = vset.pattern.permute.xlu0 0
        %520 = vperm.xlu0 %519, %v281
        %v521 = vpop.permute.xlu0 %520
        %524 = vset.pattern.permute.xlu0 0
        %525 = vperm.xlu0 %524, %v282
        %v526 = vpop.permute.xlu0 %525
        %529 = vset.pattern.permute.xlu0 0
        %530 = vperm.xlu0 %529, %v283
        %v531 = vpop.permute.xlu0 %530
        %534 = vset.pattern.permute.xlu0 0
        %535 = vperm.xlu0 %534, %v284
        %v536 = vpop.permute.xlu0 %535
        %539 = vset.pattern.permute.xlu0 0
        %540 = vperm.xlu0 %539, %v285
        %v541 = vpop.permute.xlu0 %540
        %544 = vset.pattern.permute.xlu0 0
        %545 = vperm.xlu0 %544, %v286
        %v546 = vpop.permute.xlu0 %545
        %549 = vset.pattern.permute.xlu0 0
        %550 = vperm.xlu0 %549, %v287
        %v551 = vpop.permute.xlu0 %550
        %554 = vset.pattern.permute.xlu0 0
        %555 = vperm.xlu0 %554, %v288
        %v556 = vpop.permute.xlu0 %555
        %559 = vset.pattern.permute.xlu0 0
        %560 = vperm.xlu0 %559, %v289
        %v561 = vpop.permute.xlu0 %560
        %564 = vset.pattern.permute.xlu0 0
        %565 = vperm.xlu0 %564, %v290
        %v566 = vpop.permute.xlu0 %565
        %569 = vset.pattern.permute.xlu0 0
        %570 = vperm.xlu0 %569, %v291
        %v571 = vpop.permute.xlu0 %570
        %574 = vset.pattern.permute.xlu0 0
        %575 = vperm.xlu0 %574, %v292
        %v576 = vpop.permute.xlu0 %575
        %579 = vset.pattern.permute.xlu0 0
        %580 = vperm.xlu0 %579, %v293
        %v581 = vpop.permute.xlu0 %580
        %584 = vset.pattern.permute.xlu0 0
        %585 = vperm.xlu0 %584, %v294
        %v586 = vpop.permute.xlu0 %585
        %589 = vset.pattern.permute.xlu0 0
        %590 = vperm.xlu0 %589, %v295
        %v591 = vpop.permute.xlu0 %590
        %594 = vset.pattern.permute.xlu0 0
        %595 = vperm.xlu0 %594, %v296
        %v596 = vpop.permute.xlu0 %595
        %599 = vset.pattern.permute.xlu0 0
        %600 = vperm.xlu0 %599, %v297
        %v601 = vpop.permute.xlu0 %600
        %604 = vset.pattern.permute.xlu0 0
        %605 = vperm.xlu0 %604, %v298
        %v606 = vpop.permute.xlu0 %605
        %609 = vset.pattern.permute.xlu0 0
        %610 = vperm.xlu0 %609, %v299
        %v611 = vpop.permute.xlu0 %610
        %614 = vset.pattern.permute.xlu0 0
        %615 = vperm.xlu0 %614, %v300
        %v616 = vpop.permute.xlu0 %615
        %619 = vset.pattern.permute.xlu0 0
        %620 = vperm.xlu0 %619, %v301
        %v621 = vpop.permute.xlu0 %620
        %624 = vset.pattern.permute.xlu0 0
        %625 = vperm.xlu0 %624, %v302
        %v626 = vpop.permute.xlu0 %625
        %629 = vset.pattern.permute.xlu0 0
        %630 = vperm.xlu0 %629, %v303
        %v631 = vpop.permute.xlu0 %630
        %634 = vset.pattern.permute.xlu0 0
        %635 = vperm.xlu0 %634, %v304
        %v636 = vpop.permute.xlu0 %635
        %639 = vset.pattern.permute.xlu0 0
        %640 = vperm.xlu0 %639, %v305
        %v641 = vpop.permute.xlu0 %640
        %644 = vset.pattern.permute.xlu0 0
        %645 = vperm.xlu0 %644, %v306
        %v646 = vpop.permute.xlu0 %645
        %649 = vset.pattern.permute.xlu0 0
        %650 = vperm.xlu0 %649, %v307
        %v651 = vpop.permute.xlu0 %650
        %654 = vset.pattern.permute.xlu0 0
        %655 = vperm.xlu0 %654, %v308
        %v656 = vpop.permute.xlu0 %655
        %659 = vset.pattern.permute.xlu0 0
        %660 = vperm.xlu0 %659, %v309
        %v661 = vpop.permute.xlu0 %660
        %v663 = vadd.f32 %v506, %v471
        %v664 = vadd.f32 %v511, %v472
        %v665 = vadd.f32 %v516, %v473
        %v666 = vadd.f32 %v521, %v474
        %v667 = vadd.f32 %v526, %v475
        %v668 = vadd.f32 %v531, %v476
        %v669 = vadd.f32 %v536, %v477
        %v670 = vadd.f32 %v541, %v478
        %v671 = vadd.f32 %v546, %v479
        %v672 = vadd.f32 %v551, %v480
        %v673 = vadd.f32 %v556, %v481
        %v674 = vadd.f32 %v561, %v482
        %v675 = vadd.f32 %v566, %v483
        %v676 = vadd.f32 %v571, %v484
        %v677 = vadd.f32 %v576, %v485
        %v678 = vadd.f32 %v581, %v486
        %v679 = vadd.f32 %v586, %v487
        %v680 = vadd.f32 %v591, %v488
        %v681 = vadd.f32 %v596, %v489
        %v682 = vadd.f32 %v601, %v490
        %v683 = vadd.f32 %v606, %v491
        %v684 = vadd.f32 %v611, %v492
        %v685 = vadd.f32 %v616, %v493
        %v686 = vadd.f32 %v621, %v494
        %v687 = vadd.f32 %v626, %v495
        %v688 = vadd.f32 %v631, %v496
        %v689 = vadd.f32 %v636, %v497
        %v690 = vadd.f32 %v641, %v498
        %v691 = vadd.f32 %v646, %v499
        %v692 = vadd.f32 %v651, %v500
        %v693 = vadd.f32 %v656, %v501
        %v694 = vadd.f32 %v661, %v502
        %695 = vset.pattern.permute.xlu0 1
        %696 = vperm.xlu0 %695, %v246
        %v697 = vpop.permute.xlu0 %696
        %699 = vset.pattern.permute.xlu0 1
        %700 = vperm.xlu0 %699, %v247
        %v701 = vpop.permute.xlu0 %700
        %703 = vset.pattern.permute.xlu0 1
        %704 = vperm.xlu0 %703, %v248
        %v705 = vpop.permute.xlu0 %704
        %707 = vset.pattern.permute.xlu0 1
        %708 = vperm.xlu0 %707, %v249
        %v709 = vpop.permute.xlu0 %708
        %711 = vset.pattern.permute.xlu0 1
        %712 = vperm.xlu0 %711, %v250
        %v713 = vpop.permute.xlu0 %712
        %715 = vset.pattern.permute.xlu0 1
        %716 = vperm.xlu0 %715, %v251
        %v717 = vpop.permute.xlu0 %716
        %719 = vset.pattern.permute.xlu0 1
        %720 = vperm.xlu0 %719, %v252
        %v721 = vpop.permute.xlu0 %720
        %723 = vset.pattern.permute.xlu0 1
        %724 = vperm.xlu0 %723, %v253
        %v725 = vpop.permute.xlu0 %724
        %727 = vset.pattern.permute.xlu0 1
        %728 = vperm.xlu0 %727, %v254
        %v729 = vpop.permute.xlu0 %728
        %731 = vset.pattern.permute.xlu0 1
        %732 = vperm.xlu0 %731, %v255
        %v733 = vpop.permute.xlu0 %732
        %735 = vset.pattern.permute.xlu0 1
        %736 = vperm.xlu0 %735, %v256
        %v737 = vpop.permute.xlu0 %736
        %739 = vset.pattern.permute.xlu0 1
        %740 = vperm.xlu0 %739, %v257
        %v741 = vpop.permute.xlu0 %740
        %743 = vset.pattern.permute.xlu0 1
        %744 = vperm.xlu0 %743, %v258
        %v745 = vpop.permute.xlu0 %744
        %747 = vset.pattern.permute.xlu0 1
        %748 = vperm.xlu0 %747, %v259
        %v749 = vpop.permute.xlu0 %748
        %751 = vset.pattern.permute.xlu0 1
        %752 = vperm.xlu0 %751, %v260
        %v753 = vpop.permute.xlu0 %752
        %755 = vset.pattern.permute.xlu0 1
        %756 = vperm.xlu0 %755, %v261
        %v757 = vpop.permute.xlu0 %756
        %759 = vset.pattern.permute.xlu0 1
        %760 = vperm.xlu0 %759, %v262
        %v761 = vpop.permute.xlu0 %760
        %763 = vset.pattern.permute.xlu0 1
        %764 = vperm.xlu0 %763, %v263
        %v765 = vpop.permute.xlu0 %764
        %767 = vset.pattern.permute.xlu0 1
        %768 = vperm.xlu0 %767, %v264
        %v769 = vpop.permute.xlu0 %768
        %771 = vset.pattern.permute.xlu0 1
        %772 = vperm.xlu0 %771, %v265
        %v773 = vpop.permute.xlu0 %772
        %775 = vset.pattern.permute.xlu0 1
        %776 = vperm.xlu0 %775, %v266
        %v777 = vpop.permute.xlu0 %776
        %779 = vset.pattern.permute.xlu0 1
        %780 = vperm.xlu0 %779, %v267
        %v781 = vpop.permute.xlu0 %780
        %783 = vset.pattern.permute.xlu0 1
        %784 = vperm.xlu0 %783, %v268
        %v785 = vpop.permute.xlu0 %784
        %787 = vset.pattern.permute.xlu0 1
        %788 = vperm.xlu0 %787, %v269
        %v789 = vpop.permute.xlu0 %788
        %791 = vset.pattern.permute.xlu0 1
        %792 = vperm.xlu0 %791, %v270
        %v793 = vpop.permute.xlu0 %792
        %795 = vset.pattern.permute.xlu0 1
        %796 = vperm.xlu0 %795, %v271
        %v797 = vpop.permute.xlu0 %796
        %799 = vset.pattern.permute.xlu0 1
        %800 = vperm.xlu0 %799, %v272
        %v801 = vpop.permute.xlu0 %800
        %803 = vset.pattern.permute.xlu0 1
        %804 = vperm.xlu0 %803, %v273
        %v805 = vpop.permute.xlu0 %804
        %807 = vset.pattern.permute.xlu0 1
        %808 = vperm.xlu0 %807, %v274
        %v809 = vpop.permute.xlu0 %808
        %811 = vset.pattern.permute.xlu0 1
        %812 = vperm.xlu0 %811, %v275
        %v813 = vpop.permute.xlu0 %812
        %815 = vset.pattern.permute.xlu0 1
        %816 = vperm.xlu0 %815, %v276
        %v817 = vpop.permute.xlu0 %816
        %819 = vset.pattern.permute.xlu0 1
        %820 = vperm.xlu0 %819, %v277
        %v821 = vpop.permute.xlu0 %820
        %v823 = vperm.slane %v245, 1
        %v824 = vmul.f32 %v697, %v823
        %v825 = vmul.f32 %v701, %v823
        %v826 = vmul.f32 %v705, %v823
        %v827 = vmul.f32 %v709, %v823
        %v828 = vmul.f32 %v713, %v823
        %v829 = vmul.f32 %v717, %v823
        %v830 = vmul.f32 %v721, %v823
        %v831 = vmul.f32 %v725, %v823
        %v832 = vmul.f32 %v729, %v823
        %v833 = vmul.f32 %v733, %v823
        %v834 = vmul.f32 %v737, %v823
        %v835 = vmul.f32 %v741, %v823
        %v836 = vmul.f32 %v745, %v823
        %v837 = vmul.f32 %v749, %v823
        %v838 = vmul.f32 %v753, %v823
        %v839 = vmul.f32 %v757, %v823
        %v840 = vmul.f32 %v761, %v823
        %v841 = vmul.f32 %v765, %v823
        %v842 = vmul.f32 %v769, %v823
        %v843 = vmul.f32 %v773, %v823
        %v844 = vmul.f32 %v777, %v823
        %v845 = vmul.f32 %v781, %v823
        %v846 = vmul.f32 %v785, %v823
        %v847 = vmul.f32 %v789, %v823
        %v848 = vmul.f32 %v793, %v823
        %v849 = vmul.f32 %v797, %v823
        %v850 = vmul.f32 %v801, %v823
        %v851 = vmul.f32 %v805, %v823
        %v852 = vmul.f32 %v809, %v823
        %v853 = vmul.f32 %v813, %v823
        %v854 = vmul.f32 %v817, %v823
        %v855 = vmul.f32 %v821, %v823
        %v856 = vadd.f32 %v663, %v824
        %v857 = vadd.f32 %v664, %v825
        %v858 = vadd.f32 %v665, %v826
        %v859 = vadd.f32 %v666, %v827
        %v860 = vadd.f32 %v667, %v828
        %v861 = vadd.f32 %v668, %v829
        %v862 = vadd.f32 %v669, %v830
        %v863 = vadd.f32 %v670, %v831
        %v864 = vadd.f32 %v671, %v832
        %v865 = vadd.f32 %v672, %v833
        %v866 = vadd.f32 %v673, %v834
        %v867 = vadd.f32 %v674, %v835
        %v868 = vadd.f32 %v675, %v836
        %v869 = vadd.f32 %v676, %v837
        %v870 = vadd.f32 %v677, %v838
        %v871 = vadd.f32 %v678, %v839
        %v872 = vadd.f32 %v679, %v840
        %v873 = vadd.f32 %v680, %v841
        %v874 = vadd.f32 %v681, %v842
        %v875 = vadd.f32 %v682, %v843
        %v876 = vadd.f32 %v683, %v844
        %v877 = vadd.f32 %v684, %v845
        %v878 = vadd.f32 %v685, %v846
        %v879 = vadd.f32 %v686, %v847
        %v880 = vadd.f32 %v687, %v848
        %v881 = vadd.f32 %v688, %v849
        %v882 = vadd.f32 %v689, %v850
        %v883 = vadd.f32 %v690, %v851
        %v884 = vadd.f32 %v691, %v852
        %v885 = vadd.f32 %v692, %v853
        %v886 = vadd.f32 %v693, %v854
        %v887 = vadd.f32 %v694, %v855
        %888 = vset.pattern.permute.xlu0 2
        %889 = vperm.xlu0 %888, %v246
        %v890 = vpop.permute.xlu0 %889
        %892 = vset.pattern.permute.xlu0 2
        %893 = vperm.xlu0 %892, %v247
        %v894 = vpop.permute.xlu0 %893
        %896 = vset.pattern.permute.xlu0 2
        %897 = vperm.xlu0 %896, %v248
        %v898 = vpop.permute.xlu0 %897
        %900 = vset.pattern.permute.xlu0 2
        %901 = vperm.xlu0 %900, %v249
        %v902 = vpop.permute.xlu0 %901
        %904 = vset.pattern.permute.xlu0 2
        %905 = vperm.xlu0 %904, %v250
        %v906 = vpop.permute.xlu0 %905
        %908 = vset.pattern.permute.xlu0 2
        %909 = vperm.xlu0 %908, %v251
        %v910 = vpop.permute.xlu0 %909
        %912 = vset.pattern.permute.xlu0 2
        %913 = vperm.xlu0 %912, %v252
        %v914 = vpop.permute.xlu0 %913
        %916 = vset.pattern.permute.xlu0 2
        %917 = vperm.xlu0 %916, %v253
        %v918 = vpop.permute.xlu0 %917
        %920 = vset.pattern.permute.xlu0 2
        %921 = vperm.xlu0 %920, %v254
        %v922 = vpop.permute.xlu0 %921
        %924 = vset.pattern.permute.xlu0 2
        %925 = vperm.xlu0 %924, %v255
        %v926 = vpop.permute.xlu0 %925
        %928 = vset.pattern.permute.xlu0 2
        %929 = vperm.xlu0 %928, %v256
        %v930 = vpop.permute.xlu0 %929
        %932 = vset.pattern.permute.xlu0 2
        %933 = vperm.xlu0 %932, %v257
        %v934 = vpop.permute.xlu0 %933
        %936 = vset.pattern.permute.xlu0 2
        %937 = vperm.xlu0 %936, %v258
        %v938 = vpop.permute.xlu0 %937
        %940 = vset.pattern.permute.xlu0 2
        %941 = vperm.xlu0 %940, %v259
        %v942 = vpop.permute.xlu0 %941
        %944 = vset.pattern.permute.xlu0 2
        %945 = vperm.xlu0 %944, %v260
        %v946 = vpop.permute.xlu0 %945
        %948 = vset.pattern.permute.xlu0 2
        %949 = vperm.xlu0 %948, %v261
        %v950 = vpop.permute.xlu0 %949
        %952 = vset.pattern.permute.xlu0 2
        %953 = vperm.xlu0 %952, %v262
        %v954 = vpop.permute.xlu0 %953
        %956 = vset.pattern.permute.xlu0 2
        %957 = vperm.xlu0 %956, %v263
        %v958 = vpop.permute.xlu0 %957
        %960 = vset.pattern.permute.xlu0 2
        %961 = vperm.xlu0 %960, %v264
        %v962 = vpop.permute.xlu0 %961
        %964 = vset.pattern.permute.xlu0 2
        %965 = vperm.xlu0 %964, %v265
        %v966 = vpop.permute.xlu0 %965
        %968 = vset.pattern.permute.xlu0 2
        %969 = vperm.xlu0 %968, %v266
        %v970 = vpop.permute.xlu0 %969
        %972 = vset.pattern.permute.xlu0 2
        %973 = vperm.xlu0 %972, %v267
        %v974 = vpop.permute.xlu0 %973
        %976 = vset.pattern.permute.xlu0 2
        %977 = vperm.xlu0 %976, %v268
        %v978 = vpop.permute.xlu0 %977
        %980 = vset.pattern.permute.xlu0 2
        %981 = vperm.xlu0 %980, %v269
        %v982 = vpop.permute.xlu0 %981
        %984 = vset.pattern.permute.xlu0 2
        %985 = vperm.xlu0 %984, %v270
        %v986 = vpop.permute.xlu0 %985
        %988 = vset.pattern.permute.xlu0 2
        %989 = vperm.xlu0 %988, %v271
        %v990 = vpop.permute.xlu0 %989
        %992 = vset.pattern.permute.xlu0 2
        %993 = vperm.xlu0 %992, %v272
        %v994 = vpop.permute.xlu0 %993
        %996 = vset.pattern.permute.xlu0 2
        %997 = vperm.xlu0 %996, %v273
        %v998 = vpop.permute.xlu0 %997
        %1000 = vset.pattern.permute.xlu0 2
        %1001 = vperm.xlu0 %1000, %v274
        %v1002 = vpop.permute.xlu0 %1001
        %1004 = vset.pattern.permute.xlu0 2
        %1005 = vperm.xlu0 %1004, %v275
        %v1006 = vpop.permute.xlu0 %1005
        %1008 = vset.pattern.permute.xlu0 2
        %1009 = vperm.xlu0 %1008, %v276
        %v1010 = vpop.permute.xlu0 %1009
        %1012 = vset.pattern.permute.xlu0 2
        %1013 = vperm.xlu0 %1012, %v277
        %v1014 = vpop.permute.xlu0 %1013
        %v1016 = vperm.slane %v245, 2
        %v1017 = vmul.f32 %v890, %v1016
        %v1018 = vmul.f32 %v894, %v1016
        %v1019 = vmul.f32 %v898, %v1016
        %v1020 = vmul.f32 %v902, %v1016
        %v1021 = vmul.f32 %v906, %v1016
        %v1022 = vmul.f32 %v910, %v1016
        %v1023 = vmul.f32 %v914, %v1016
        %v1024 = vmul.f32 %v918, %v1016
        %v1025 = vmul.f32 %v922, %v1016
        %v1026 = vmul.f32 %v926, %v1016
        %v1027 = vmul.f32 %v930, %v1016
        %v1028 = vmul.f32 %v934, %v1016
        %v1029 = vmul.f32 %v938, %v1016
        %v1030 = vmul.f32 %v942, %v1016
        %v1031 = vmul.f32 %v946, %v1016
        %v1032 = vmul.f32 %v950, %v1016
        %v1033 = vmul.f32 %v954, %v1016
        %v1034 = vmul.f32 %v958, %v1016
        %v1035 = vmul.f32 %v962, %v1016
        %v1036 = vmul.f32 %v966, %v1016
        %v1037 = vmul.f32 %v970, %v1016
        %v1038 = vmul.f32 %v974, %v1016
        %v1039 = vmul.f32 %v978, %v1016
        %v1040 = vmul.f32 %v982, %v1016
        %v1041 = vmul.f32 %v986, %v1016
        %v1042 = vmul.f32 %v990, %v1016
        %v1043 = vmul.f32 %v994, %v1016
        %v1044 = vmul.f32 %v998, %v1016
        %v1045 = vmul.f32 %v1002, %v1016
        %v1046 = vmul.f32 %v1006, %v1016
        %v1047 = vmul.f32 %v1010, %v1016
        %v1048 = vmul.f32 %v1014, %v1016
        %v1049 = vadd.f32 %v856, %v1017
        %v1050 = vadd.f32 %v857, %v1018
        %v1051 = vadd.f32 %v858, %v1019
        %v1052 = vadd.f32 %v859, %v1020
        %v1053 = vadd.f32 %v860, %v1021
        %v1054 = vadd.f32 %v861, %v1022
        %v1055 = vadd.f32 %v862, %v1023
        %v1056 = vadd.f32 %v863, %v1024
        %v1057 = vadd.f32 %v864, %v1025
        %v1058 = vadd.f32 %v865, %v1026
        %v1059 = vadd.f32 %v866, %v1027
        %v1060 = vadd.f32 %v867, %v1028
        %v1061 = vadd.f32 %v868, %v1029
        %v1062 = vadd.f32 %v869, %v1030
        %v1063 = vadd.f32 %v870, %v1031
        %v1064 = vadd.f32 %v871, %v1032
        %v1065 = vadd.f32 %v872, %v1033
        %v1066 = vadd.f32 %v873, %v1034
        %v1067 = vadd.f32 %v874, %v1035
        %v1068 = vadd.f32 %v875, %v1036
        %v1069 = vadd.f32 %v876, %v1037
        %v1070 = vadd.f32 %v877, %v1038
        %v1071 = vadd.f32 %v878, %v1039
        %v1072 = vadd.f32 %v879, %v1040
        %v1073 = vadd.f32 %v880, %v1041
        %v1074 = vadd.f32 %v881, %v1042
        %v1075 = vadd.f32 %v882, %v1043
        %v1076 = vadd.f32 %v883, %v1044
        %v1077 = vadd.f32 %v884, %v1045
        %v1078 = vadd.f32 %v885, %v1046
        %v1079 = vadd.f32 %v886, %v1047
        %v1080 = vadd.f32 %v887, %v1048
        %v1081 = vmax.f32 %v1049, 0.0
        %v1082 = vmax.f32 %v1050, 0.0
        %v1083 = vmax.f32 %v1051, 0.0
        %v1084 = vmax.f32 %v1052, 0.0
        %v1085 = vmax.f32 %v1053, 0.0
        %v1086 = vmax.f32 %v1054, 0.0
        %v1087 = vmax.f32 %v1055, 0.0
        %v1088 = vmax.f32 %v1056, 0.0
        %v1089 = vmax.f32 %v1057, 0.0
        %v1090 = vmax.f32 %v1058, 0.0
        %v1091 = vmax.f32 %v1059, 0.0
        %v1092 = vmax.f32 %v1060, 0.0
        %v1093 = vmax.f32 %v1061, 0.0
        %v1094 = vmax.f32 %v1062, 0.0
        %v1095 = vmax.f32 %v1063, 0.0
        %v1096 = vmax.f32 %v1064, 0.0
        %v1097 = vmax.f32 %v1065, 0.0
        %v1098 = vmax.f32 %v1066, 0.0
        %v1099 = vmax.f32 %v1067, 0.0
        %v1100 = vmax.f32 %v1068, 0.0
        %v1101 = vmax.f32 %v1069, 0.0
        %v1102 = vmax.f32 %v1070, 0.0
        %v1103 = vmax.f32 %v1071, 0.0
        %v1104 = vmax.f32 %v1072, 0.0
        %v1105 = vmax.f32 %v1073, 0.0
        %v1106 = vmax.f32 %v1074, 0.0
        %v1107 = vmax.f32 %v1075, 0.0
        %v1108 = vmax.f32 %v1076, 0.0
        %v1109 = vmax.f32 %v1077, 0.0
        %v1110 = vmax.f32 %v1078, 0.0
        %v1111 = vmax.f32 %v1079, 0.0
        %v1112 = vmax.f32 %v1080, 0.0
        %v1113 = vld [vmem:[%s3] sm:$0xff]
        %v1114 = vld [vmem:[%s3 + $0x8] sm:$0xff]
        %v1115 = vld [vmem:[%s3 + $0x10] sm:$0xff]
        %v1116 = vld [vmem:[%s3 + $0x18] sm:$0xff]
        %v1117 = vld [vmem:[%s3 + $0x20] sm:$0xff]
        %v1118 = vld [vmem:[%s3 + $0x28] sm:$0xff]
        %v1119 = vld [vmem:[%s3 + $0x30] sm:$0xff]
        %v1120 = vld [vmem:[%s3 + $0x38] sm:$0xff]
        %v1121 = vpack.c.bf16 %v1115, %v1113
        %v1122 = vpack.c.bf16 %v1116, %v1114
        %v1123 = vpack.c.bf16 %v1119, %v1117
        %v1124 = vpack.c.bf16 %v1120, %v1118
        %v1125 = vpack.c.bf16 %v1082, %v1081
        %v1126 = vpack.c.bf16 %v1084, %v1083
        %v1127 = vpack.c.bf16 %v1086, %v1085
        %v1128 = vpack.c.bf16 %v1088, %v1087
        %v1129 = vpack.c.bf16 %v1090, %v1089
        %v1130 = vpack.c.bf16 %v1092, %v1091
        %v1131 = vpack.c.bf16 %v1094, %v1093
        %v1132 = vpack.c.bf16 %v1096, %v1095
        %v1133 = vpack.c.bf16 %v1098, %v1097
        %v1134 = vpack.c.bf16 %v1100, %v1099
        %v1135 = vpack.c.bf16 %v1102, %v1101
        %v1136 = vpack.c.bf16 %v1104, %v1103
        %v1137 = vpack.c.bf16 %v1106, %v1105
        %v1138 = vpack.c.bf16 %v1108, %v1107
        %v1139 = vpack.c.bf16 %v1110, %v1109
        %v1140 = vpack.c.bf16 %v1112, %v1111
        %v1141 = vld [vmem:[%s4] sm:$0xff]
        %v1142 = vld [vmem:[%s4 + $0x8] sm:$0xff]
        %v1143 = vld [vmem:[%s4 + $0x10] sm:$0xff]
        %v1144 = vld [vmem:[%s4 + $0x18] sm:$0xff]
        %1146 = vset.pattern.permute.xlu0 0
        %1147 = vperm.xlu0 %1146, %v1141
        %v1148 = vpop.permute.xlu0 %1147
        %1151 = vset.pattern.permute.xlu0 0
        %1152 = vperm.xlu0 %1151, %v1142
        %v1153 = vpop.permute.xlu0 %1152
        %1156 = vset.pattern.permute.xlu0 0
        %1157 = vperm.xlu0 %1156, %v1143
        %v1158 = vpop.permute.xlu0 %1157
        %1161 = vset.pattern.permute.xlu0 0
        %1162 = vperm.xlu0 %1161, %v1144
        %v1163 = vpop.permute.xlu0 %1162
        %1165 = vmatpush.bf16.msra.mxu0 %v1132
        %1166 = vmatpush.bf16.msra.mxu0 %v1131
        %1167 = vmatpush.bf16.msra.mxu0 %v1130
        %1168 = vmatpush.bf16.msra.mxu0 %v1129
        %1169 = vmatpush.bf16.msra.mxu0 %v1128
        %1170 = vmatpush.bf16.msra.mxu0 %v1127
        %1171 = vmatpush.bf16.msra.mxu0 %v1126
        %1172 = vmatpush.bf16.msra.mxu0 %v1125
        %1173 = vmatmul.bf16.gmra.mxu0 %v1121
        %v1174 = vpop.f32.mrf.mxu0
        %v1175 = vadd.f32 %v1148, %v1174
        %v1176 = vpop.f32.mrf.mxu0
        %v1177 = vadd.f32 %v1153, %v1176
        %1178 = vmatmul.bf16.gmra.mxu0 %v1123
        %v1179 = vpop.f32.mrf.mxu0
        %v1180 = vadd.f32 %v1158, %v1179
        %v1181 = vpop.f32.mrf.mxu0
        %v1182 = vadd.f32 %v1163, %v1181
        %1183 = vdwg.mxu0
        %1184 = vmatpush.bf16.msra.mxu0 %v1140
        %1185 = vmatpush.bf16.msra.mxu0 %v1139
        %1186 = vmatpush.bf16.msra.mxu0 %v1138
        %1187 = vmatpush.bf16.msra.mxu0 %v1137
        %1188 = vmatpush.bf16.msra.mxu0 %v1136
        %1189 = vmatpush.bf16.msra.mxu0 %v1135
        %1190 = vmatpush.bf16.msra.mxu0 %v1134
        %1191 = vmatpush.bf16.msra.mxu0 %v1133
        %1192 = vmatmul.bf16.gmra.mxu0 %v1122
        %v1193 = vpop.f32.mrf.mxu0
        %v1194 = vadd.f32 %v1175, %v1193
        %v1195 = vpop.f32.mrf.mxu0
        %v1196 = vadd.f32 %v1177, %v1195
        %1197 = vmatmul.bf16.gmra.mxu0 %v1124
        %v1198 = vpop.f32.mrf.mxu0
        %v1199 = vadd.f32 %v1180, %v1198
        %v1200 = vpop.f32.mrf.mxu0
        %v1201 = vadd.f32 %v1182, %v1200
        %1202 = vdwg.mxu0
        %vm1203 = vcmask 523264
        %1204 = vst.msk [vmem:[%s237] sm:$0xff] %vm1203, %v1194
        %1205 = vst.msk [vmem:[%s237 + $0x8] sm:$0xff] %vm1203, %v1196
        %1206 = vst.msk [vmem:[%s237 + $0x10] sm:$0xff] %vm1203, %v1199
        %1207 = vst.msk [vmem:[%s237 + $0x18] sm:$0xff] %vm1203, %v1201
        %s1208 = sand.u32 %s153, 1
        %s1209 = scalar_lea.sflag [#allocation3], %s1208
        %s1210 = sand.u32 %s153, 1
        %s1211 = smul.addr %s1210, 32
        %s1212 = scalar_lea.vmem [#allocation2], %s1211
        // Predicated region
        $region41: #{tpu_custom_call.1} parent=39 // pred_check
          %p1213 = pneg %p163
        $region42: #{tpu_custom_call.1} parent=39 // pred_check_branch
          %1215 = sbr.rel (%p1213) target = $region44
        $region43: #{tpu_custom_call.1} parent=39 // pred_region
          %1217 = vsyncadd %s1209, 0
          %s1218 = smul.addr %s23, 4
          %s1219 = sadd.s32 %s24, %s1218
          %s1220 = smul.addr %s1219, 8
          %s1221 = scalar_lea.hbm %s5, %s1220
          %s1222 = sshll.u32 %s1212, 4
          %s1223 = int_to_ptr.vmem [resolvable:$true] %s1222
          %s1224 = sshll.u32 %s1221, 4
          %s1225 = int_to_ptr.hbm [resolvable:$true] %s1224
          %1230 = dma.vmem_to_hbm [thread:$0]  %s1223, 512, %s1225, %s1209, 128, 128, 8
        $region44: #{tpu_custom_call.1} parent=39 // pred_fallthru
          _
      $region40: #{tpu_custom_call.1} parent=5 // pred_fallthru
        _
      %p1231 = scmp.le.s32.totalorder 2, %s14
      // Predicated region
      $region45: #{tpu_custom_call.1} parent=5 // pred_check
        %p1232 = pneg %p1231
      $region46: #{tpu_custom_call.1} parent=5 // pred_check_branch
        %1234 = sbr.rel (%p1232) target = $region48
      $region47: #{tpu_custom_call.1} parent=5 // pred_region
        %s1235 = ssub.s32 %s14, 2
        // Predicated region
        $region49: #{tpu_custom_call.1} parent=47 // pred_check
          %p1236 = pneg %p169
        $region50: #{tpu_custom_call.1} parent=47 // pred_check_branch
          %1238 = sbr.rel (%p1236) target = $region52
        $region51: #{tpu_custom_call.1} parent=47 // pred_region
          %s1239 = sand.u32 %s154, 1
          %s1240 = scalar_lea.sflag [#allocation3], %s1239
          %s1241 = sand.u32 %s154, 1
          %s1242 = smul.addr %s1241, 32
          %s1243 = scalar_lea.vmem [#allocation2], %s1242
          %1245 = dma.done %s1240, 512
        $region52: #{tpu_custom_call.1} parent=47 // pred_fallthru
          _
      $region48: #{tpu_custom_call.1} parent=5 // pred_fallthru
        _
    $region6: #{tpu_custom_call.1} parent=1 // loop_footer
      %s18 = sadd.s32 1, %s14
    $region7: #{tpu_custom_call.1} parent=1 // loop_footer_branch
      %13 = sbr.rel target = $region3
    $region8: #{tpu_custom_call.1} parent=1 // loop_exit
      _
    %1246 = vsyncpa [#allocation3], 1
    %s1247 = scalar_lea.sflag [#allocation3], 1
    %1248 = vsyncpa %s1247, 1

</llo_original>
